<compile_context>
chip_gen: v7x
topology: tpu7x:2x2x1
jax: 0.10.0
libtpu: 0.0.40
codegen_flags: <defaults>
</compile_context>

<pallas_src>
import jax
import jax.numpy as jnp
from jax.experimental import pallas as pl
from jax.experimental.pallas import tpu as pltpu


_POOL_CHUNK = 512  # lanes per pool-reduction slice (bounds the f32 upcast temp)


# --------------------------------------------------------------------------
# Kernel
# --------------------------------------------------------------------------
def _se_kernel(x_ref, w1t_ref, b1_ref, w2t_ref, b2_ref, o_ref):
    """Fused SE forward for one block of B samples.

    x_ref / o_ref : (B, C, HW) in the input's native dtype (f32 or bf16).
    w1t_ref (C, mid), b1_ref (1, mid), w2t_ref (mid, C), b2_ref (1, C) : f32.
    """
    B, C, HW = x_ref.shape

    # ---- Squeeze: global average pool over HW, accumulated in f32. -------
    # Chunked reduction: only a (B, C, <=_POOL_CHUNK) slice is upcast to f32
    # at a time, never the whole block.  Chunk starts are Python constants,
    # so the slices are static (cheap) ref views.
    pooled = jnp.zeros((B, C), jnp.float32)
    for s0 in range(0, HW, _POOL_CHUNK):
        c = min(_POOL_CHUNK, HW - s0)
        xs = x_ref[:, :, s0:s0 + c]
        pooled = pooled + jnp.sum(xs.astype(jnp.float32), axis=-1)
    pooled = pooled * jnp.float32(1.0 / HW)                         # (B, C)

    # ---- Excitation: 1x1 convs as tiny FCs (f32 accumulation). ----------
    h = jnp.dot(pooled, w1t_ref[...], preferred_element_type=jnp.float32)
    h = jnp.maximum(h + b1_ref[...], 0.0)                           # (B, mid)
    s = jnp.dot(h, w2t_ref[...], preferred_element_type=jnp.float32)
    s = jax.nn.sigmoid(s + b2_ref[...])                             # (B, C)

    # ---- Scale: re-read x (not kept live across the FC section) and ------
    # broadcast the per-channel gate over spatial positions, native dtype.
    gate = s.astype(o_ref.dtype)[:, :, None]                        # (B, C, 1)
    o_ref[...] = x_ref[...] * gate


# --------------------------------------------------------------------------
# Block-size / VMEM budgeting
# --------------------------------------------------------------------------
def _vmem_cap_bytes():
    """Per-generation scoped-VMEM budget (leaves headroom for compiler
    internal scratch).  v5e/v6e: 128 MiB physical; v7x: 64 MiB per TC."""
    kind = ""
    try:
        kind = jax.devices()[0].device_kind.lower()
    except Exception:
        pass
    if "v7" in kind:
        return 44 << 20
    if "v5" in kind or "v6" in kind:
        return 64 << 20
    return 40 << 20  # unknown part: stay conservative


def _vmem_need_bytes(b, c, hw, x_itemsize, param_bytes):
    """Accurate footprint for a per-step batch of `b` samples."""
    blk = b * c * hw * x_itemsize
    pool_tmp = 2 * b * c * min(hw, _POOL_CHUNK) * 4   # f32 chunk temporaries
    # 2x double-buffered input block + 2x output block + 1 block of headroom
    # for the fused scale/store temporaries, plus params + compiler scratch.
    return 5 * blk + pool_tmp + 2 * param_bytes + (2 << 20)


def _pick_batch_block(n, c, hw, x_itemsize, param_bytes, cap_bytes):
    """Largest per-step batch B (divisor of n) whose footprint fits the VMEM
    budget.  Once blocks reach ~cap/6 we stop growing so the grid keeps
    several steps for read/write DMA pipelining (and megacore sharding)."""
    target_block = max(cap_bytes // 6, 4 << 20)
    per_sample = c * hw * x_itemsize
    fitting = [
        b for b in range(1, n + 1)
        if n % b == 0
        and _vmem_need_bytes(b, c, hw, x_itemsize, param_bytes) <= cap_bytes
    ]
    if not fitting:
        # TODO(synk): two-pass fallback (pool pass + scale pass) for single
        # samples whose block does not fit VMEM; for now run B=1 with a
        # raised limit and rely on the compiler to pipeline/spill.
        return 1
    small_enough = [b for b in fitting if b * per_sample <= target_block]
    if small_enough:
        return max(small_enough)       # grow the block up to the target size
    return min(fitting)                # blocks already large: maximize steps


# --------------------------------------------------------------------------
# Wrapper
# --------------------------------------------------------------------------
@jax.jit
def se_block(x_nchw, w1, b1, w2, b2):
    """SEBlock forward.

    x_nchw : (N, C, H, W), any float dtype (kept native end-to-end)
    w1     : (mid, C)  -- conv1 1x1 weight (squeezed), b1: (mid,)
    w2     : (C, mid)  -- conv2 1x1 weight (squeezed), b2: (C,)
    returns: (N, C, H, W), same dtype as x
    """
    N, C, H, W = x_nchw.shape
    mid = w1.shape[0]
    HW = H * W
    dtype = x_nchw.dtype

    # Native-dtype activations; tiny FC params in f32 (perf-irrelevant).
    x_flat = x_nchw.reshape(N, C, HW)
    w1t = w1.T.astype(jnp.float32)                  # (C, mid)
    w2t = w2.T.astype(jnp.float32)                  # (mid, C)
    b1r = b1.reshape(1, mid).astype(jnp.float32)
    b2r = b2.reshape(1, C).astype(jnp.float32)

    itemsize = x_flat.dtype.itemsize
    param_bytes = 4 * (2 * C * mid + C + mid)
    cap = _vmem_cap_bytes()
    B = _pick_batch_block(N, C, HW, itemsize, param_bytes, cap)
    grid = (N // B,)

    need = _vmem_need_bytes(B, C, HW, itemsize, param_bytes)
    vmem_limit = int(min(max(need, 16 << 20), cap))
    if need > cap:                    # oversized-sample fallback (see TODO)
        vmem_limit = int(need)

    out = pl.pallas_call(
        _se_kernel,
        out_shape=jax.ShapeDtypeStruct((N, C, HW), dtype),
        grid_spec=pltpu.PrefetchScalarGridSpec(
            num_scalar_prefetch=0,
            grid=grid,
            in_specs=[
                pl.BlockSpec((B, C, HW), lambda n: (n, 0, 0)),   # x block
                pl.BlockSpec((C, mid), lambda n: (0, 0)),        # w1^T
                pl.BlockSpec((1, mid), lambda n: (0, 0)),        # b1
                pl.BlockSpec((mid, C), lambda n: (0, 0)),        # w2^T
                pl.BlockSpec((1, C), lambda n: (0, 0)),          # b2
            ],
            out_specs=pl.BlockSpec((B, C, HW), lambda n: (n, 0, 0)),
        ),
        compiler_params=pltpu.CompilerParams(
            dimension_semantics=("parallel",),
            vmem_limit_bytes=vmem_limit,
        ),
        input_output_aliases={0: 0},   # in-place-safe elementwise scale
    )(x_flat, w1t, b1r, w2t, b2r)

    return out.reshape(N, C, H, W)


def se_block_ref(x_nchw, w1, b1, w2, b2):
    """Pure-JAX (f32) reference matching the PyTorch SEBlock forward."""
    x32 = x_nchw.astype(jnp.float32)
    pooled = jnp.mean(x32, axis=(2, 3))                              # (N, C)
    h = jnp.maximum(pooled @ w1.T + b1, 0.0)                         # (N, mid)
    s = jax.nn.sigmoid(h @ w2.T + b2)                                # (N, C)
    return x32 * s[:, :, None, None]


if __name__ == "__main__":
    # Small shapes consistent with the module (channels // reduction >= 1).
    N, C, H, W = 4, 32, 16, 16
    reduction = 4
    mid = C // reduction

    key = jax.random.PRNGKey(0)
    kx, k1, kb1, k2, kb2 = jax.random.split(key, 5)

    x = jax.random.normal(kx, (N, C, H, W), dtype=jnp.float32)
    # Deterministic synthetic parameters (1x1 conv weights squeezed to 2-D).
    w1 = jax.random.normal(k1, (mid, C), dtype=jnp.float32) * 0.1
    b1 = jax.random.normal(kb1, (mid,), dtype=jnp.float32) * 0.1
    w2 = jax.random.normal(k2, (C, mid), dtype=jnp.float32) * 0.1
    b2 = jax.random.normal(kb2, (C,), dtype=jnp.float32) * 0.1

    # float32 path (PyTorch default dtype).
    out = jax.block_until_ready(se_block(x, w1, b1, w2, b2))
    ref = se_block_ref(x, w1, b1, w2, b2)
    assert out.shape == (N, C, H, W) and out.dtype == jnp.float32
    assert jnp.allclose(out, ref, atol=1e-5, rtol=1e-5), "f32 mismatch vs reference"

    # bfloat16 path: native-dtype I/O (halved HBM traffic); pooling and the
    # two FCs accumulate in f32; the gate multiply is bf16 by design.
    x_bf16 = x.astype(jnp.bfloat16)
    out_bf16 = jax.block_until_ready(se_block(x_bf16, w1, b1, w2, b2))
    ref_bf16 = se_block_ref(x_bf16, w1, b1, w2, b2)
    assert out_bf16.shape == (N, C, H, W) and out_bf16.dtype == jnp.bfloat16
    assert jnp.allclose(out_bf16.astype(jnp.float32), ref_bf16,
                        atol=3e-2, rtol=3e-2), "bf16 mismatch vs reference"

    print("KERNEL_OK")
</pallas_src>

<mosaic_0001>
module attributes {stable_mosaic.version = 11 : i64} {
  func.func @_se_kernel(%arg0: i32, %arg1: memref<4x32x256xf32, #tpu.memory_space<vmem>>, %arg2: memref<32x8xf32, #tpu.memory_space<vmem>>, %arg3: memref<1x8xf32, #tpu.memory_space<vmem>>, %arg4: memref<8x32xf32, #tpu.memory_space<vmem>>, %arg5: memref<1x32xf32, #tpu.memory_space<vmem>>, %arg6: memref<4x32x256xf32, #tpu.memory_space<vmem>>) attributes {dimension_semantics = [#tpu.dimension_semantics<parallel>], iteration_bounds = array<i64: 1>, scalar_prefetch = 0 : i64, scratch_operands = 0 : i64, tpu.core_type = #tpu.core_type<tc>, window_params = [{transform_indices = @transform_0, window_bounds = array<i64: 4, 32, 256>}, {pipeline_mode = #tpu.pipeline_mode<synchronous>, transform_indices = @transform_1, window_bounds = array<i64: 32, 8>}, {pipeline_mode = #tpu.pipeline_mode<synchronous>, transform_indices = @transform_2, window_bounds = array<i64: 1, 8>}, {pipeline_mode = #tpu.pipeline_mode<synchronous>, transform_indices = @transform_3, window_bounds = array<i64: 8, 32>}, {pipeline_mode = #tpu.pipeline_mode<synchronous>, transform_indices = @transform_4, window_bounds = array<i64: 1, 32>}, {transform_indices = @transform_5, window_bounds = array<i64: 4, 32, 256>}]} {
    %cst = arith.constant 0.000000e+00 : f32
    %0 = vector.broadcast %cst : f32 to vector<4x32xf32>
    %c0 = arith.constant 0 : index
    %c0_0 = arith.constant 0 : index
    %c0_1 = arith.constant 0 : index
    %1 = vector.load %arg1[%c0, %c0_0, %c0_1] : memref<4x32x256xf32, #tpu.memory_space<vmem>>, vector<4x32x256xf32>
    %cst_2 = arith.constant dense<0.000000e+00> : vector<4x32xf32>
    %2 = vector.multi_reduction <add>, %1, %cst_2 [2] : vector<4x32x256xf32> to vector<4x32xf32>
    %3 = arith.addf %0, %2 : vector<4x32xf32>
    %cst_3 = arith.constant 3.906250e-03 : f32
    %4 = vector.broadcast %cst_3 : f32 to vector<4x32xf32>
    %5 = arith.mulf %3, %4 : vector<4x32xf32>
    %c0_4 = arith.constant 0 : index
    %c0_5 = arith.constant 0 : index
    %6 = vector.load %arg2[%c0_4, %c0_5] : memref<32x8xf32, #tpu.memory_space<vmem>>, vector<32x8xf32>
    %cst_6 = arith.constant dense<0.000000e+00> : vector<4x8xf32>
    %7 = tpu.matmul %5, %6, %cst_6 {dimension_numbers = #tpu.dot_dimension_numbers<[1], [0], [0], [1], [0, 0, 1, 1], [], []>} : vector<4x32xf32>, vector<32x8xf32>, vector<4x8xf32> -> vector<4x8xf32>
    %c0_7 = arith.constant 0 : index
    %c0_8 = arith.constant 0 : index
    %8 = vector.load %arg3[%c0_7, %c0_8] : memref<1x8xf32, #tpu.memory_space<vmem>>, vector<1x8xf32>
    %9 = vector.broadcast %8 : vector<1x8xf32> to vector<4x8xf32>
    %10 = arith.addf %7, %9 : vector<4x8xf32>
    %cst_9 = arith.constant 0.000000e+00 : f32
    %11 = vector.broadcast %cst_9 : f32 to vector<4x8xf32>
    %12 = arith.maximumf %10, %11 : vector<4x8xf32>
    %c0_10 = arith.constant 0 : index
    %c0_11 = arith.constant 0 : index
    %13 = vector.load %arg4[%c0_10, %c0_11] : memref<8x32xf32, #tpu.memory_space<vmem>>, vector<8x32xf32>
    %cst_12 = arith.constant dense<0.000000e+00> : vector<4x32xf32>
    %14 = tpu.matmul %12, %13, %cst_12 {dimension_numbers = #tpu.dot_dimension_numbers<[1], [0], [0], [1], [0, 0, 1, 1], [], []>} : vector<4x8xf32>, vector<8x32xf32>, vector<4x32xf32> -> vector<4x32xf32>
    %c0_13 = arith.constant 0 : index
    %c0_14 = arith.constant 0 : index
    %15 = vector.load %arg5[%c0_13, %c0_14] : memref<1x32xf32, #tpu.memory_space<vmem>>, vector<1x32xf32>
    %16 = vector.broadcast %15 : vector<1x32xf32> to vector<4x32xf32>
    %17 = arith.addf %14, %16 : vector<4x32xf32>
    %18 = arith.negf %17 : vector<4x32xf32>
    %19 = math.exp %18 : vector<4x32xf32>
    %cst_15 = arith.constant 1.000000e+00 : f32
    %20 = vector.broadcast %cst_15 : f32 to vector<4x32xf32>
    %21 = arith.addf %20, %19 : vector<4x32xf32>
    %22 = arith.divf %20, %21 : vector<4x32xf32>
    %23 = vector.shape_cast %22 : vector<4x32xf32> to vector<4x32x1xf32>
    %c0_16 = arith.constant 0 : index
    %c0_17 = arith.constant 0 : index
    %c0_18 = arith.constant 0 : index
    %24 = vector.load %arg1[%c0_16, %c0_17, %c0_18] : memref<4x32x256xf32, #tpu.memory_space<vmem>>, vector<4x32x256xf32>
    %25 = vector.broadcast %23 : vector<4x32x1xf32> to vector<4x32x256xf32>
    %26 = arith.mulf %24, %25 : vector<4x32x256xf32>
    %c0_19 = arith.constant 0 : index
    %c0_20 = arith.constant 0 : index
    %c0_21 = arith.constant 0 : index
    %27 = vector.load %arg6[%c0_19, %c0_20, %c0_21] : memref<4x32x256xf32, #tpu.memory_space<vmem>>, vector<4x32x256xf32>
    tpu.vector_store %arg6[%c0_19, %c0_20, %c0_21], %26 {strides = array<i32>} : memref<4x32x256xf32, #tpu.memory_space<vmem>>, vector<4x32x256xf32>,
    return
  }
  func.func @transform_0(%arg0: i32) -> (i32, i32, i32) {
    %c0_i32 = arith.constant 0 : i32
    %c0_i32_0 = arith.constant 0 : i32
    %c0_i32_1 = arith.constant 0 : i32
    return %arg0, %c0_i32, %c0_i32_0 : i32, i32, i32
  }
  func.func @transform_1(%arg0: i32) -> (i32, i32) {
    %c0_i32 = arith.constant 0 : i32
    %c0_i32_0 = arith.constant 0 : i32
    %c0_i32_1 = arith.constant 0 : i32
    return %c0_i32, %c0_i32_0 : i32, i32
  }
  func.func @transform_2(%arg0: i32) -> (i32, i32) {
    %c0_i32 = arith.constant 0 : i32
    %c0_i32_0 = arith.constant 0 : i32
    %c0_i32_1 = arith.constant 0 : i32
    return %c0_i32, %c0_i32_0 : i32, i32
  }
  func.func @transform_3(%arg0: i32) -> (i32, i32) {
    %c0_i32 = arith.constant 0 : i32
    %c0_i32_0 = arith.constant 0 : i32
    %c0_i32_1 = arith.constant 0 : i32
    return %c0_i32, %c0_i32_0 : i32, i32
  }
  func.func @transform_4(%arg0: i32) -> (i32, i32) {
    %c0_i32 = arith.constant 0 : i32
    %c0_i32_0 = arith.constant 0 : i32
    %c0_i32_1 = arith.constant 0 : i32
    return %c0_i32, %c0_i32_0 : i32, i32
  }
  func.func @transform_5(%arg0: i32) -> (i32, i32, i32) {
    %c0_i32 = arith.constant 0 : i32
    %c0_i32_0 = arith.constant 0 : i32
    %c0_i32_1 = arith.constant 0 : i32
    return %arg0, %c0_i32, %c0_i32_0 : i32, i32, i32
  }
}

</mosaic_0001>

<llo_original>
// kernel: se_block.1
$region0: #{se_block.1}
  #allocation0 [shape = 'u32[]', space=smem, size = 0x4, offset = 0x4, fixed_abs, tag = 'smem constant byte address 0x4 - core index']
  #allocation1 [shape = 'u32[144,128]{1,0:T(1,128)}', space=vmem, size = 0x12000, scoped, tag = 'internal scratch']
  %s0 = inlined_call_operand.vmem [shape: f32[4,32,256], index: 0, kind: input, shape index: {}, may-alias: {0,5}]
  %s1 = inlined_call_operand.vmem [shape: f32[32,8], index: 1, kind: input, shape index: {}]
  %s2 = inlined_call_operand.vmem [shape: f32[1,8], index: 2, kind: input, shape index: {}]
  %s3 = inlined_call_operand.vmem [shape: f32[8,32], index: 3, kind: input, shape index: {}]
  %s4 = inlined_call_operand.vmem [shape: f32[1,32], index: 4, kind: input, shape index: {}]
  %s5 = inlined_call_operand.vmem [shape: f32[4,32,256], index: 5, kind: output, shape index: {}, may-alias: {0,5}]
  %s6 = sld [smem:[#allocation0]]
  $region30: #{se_block.1} parent=0
    _
  %s8 = ssub.s32 1, %s6
  %s9 = scalar_select 0, %s8, %s6
  // Predicated region
  $region2: #{se_block.1} parent=0 // pred_check
    _
  $region3: #{se_block.1} parent=0 // pred_check_branch
    %11 = sbr.rel (0) target = $region5
  $region4: #{se_block.1} parent=0 // pred_region
    _
  $region5: #{se_block.1} parent=0 // pred_fallthru
    _
  // Predicated region
  $region6: #{se_block.1} parent=0 // pred_check
    _
  $region7: #{se_block.1} parent=0 // pred_check_branch
    %13 = sbr.rel (0) target = $region9
  $region8: #{se_block.1} parent=0 // pred_region
    _
  $region9: #{se_block.1} parent=0 // pred_fallthru
    _
  // Predicated region
  $region10: #{se_block.1} parent=0 // pred_check
    _
  $region11: #{se_block.1} parent=0 // pred_check_branch
    %15 = sbr.rel (0) target = $region13
  $region12: #{se_block.1} parent=0 // pred_region
    _
  $region13: #{se_block.1} parent=0 // pred_fallthru
    _
  // Predicated region
  $region14: #{se_block.1} parent=0 // pred_check
    _
  $region15: #{se_block.1} parent=0 // pred_check_branch
    %17 = sbr.rel (0) target = $region17
  $region16: #{se_block.1} parent=0 // pred_region
    _
  $region17: #{se_block.1} parent=0 // pred_fallthru
    _
  // Predicated region
  $region18: #{se_block.1} parent=0 // pred_check
    _
  $region19: #{se_block.1} parent=0 // pred_check_branch
    %19 = sbr.rel (0) target = $region21
  $region20: #{se_block.1} parent=0 // pred_region
    _
  $region21: #{se_block.1} parent=0 // pred_fallthru
    _
  %v20 = vld [vmem:[%s0] sm:$0xff]
  %v21 = vld [vmem:[%s0 + $0x8] sm:$0xff]
  %v22 = vld [vmem:[%s0 + $0x10] sm:$0xff]
  %v23 = vld [vmem:[%s0 + $0x18] sm:$0xff]
  %v24 = vld [vmem:[%s0 + $0x20] sm:$0xff]
  %v25 = vld [vmem:[%s0 + $0x28] sm:$0xff]
  %v26 = vld [vmem:[%s0 + $0x30] sm:$0xff]
  %v27 = vld [vmem:[%s0 + $0x38] sm:$0xff]
  %v28 = vld [vmem:[%s0 + $0x40] sm:$0xff]
  %v29 = vld [vmem:[%s0 + $0x48] sm:$0xff]
  %v30 = vld [vmem:[%s0 + $0x50] sm:$0xff]
  %v31 = vld [vmem:[%s0 + $0x58] sm:$0xff]
  %v32 = vld [vmem:[%s0 + $0x60] sm:$0xff]
  %v33 = vld [vmem:[%s0 + $0x68] sm:$0xff]
  %v34 = vld [vmem:[%s0 + $0x70] sm:$0xff]
  %v35 = vld [vmem:[%s0 + $0x78] sm:$0xff]
  %v36 = vld [vmem:[%s0 + $0x80] sm:$0xff]
  %v37 = vld [vmem:[%s0 + $0x88] sm:$0xff]
  %v38 = vld [vmem:[%s0 + $0x90] sm:$0xff]
  %v39 = vld [vmem:[%s0 + $0x98] sm:$0xff]
  %v40 = vld [vmem:[%s0 + $0xa0] sm:$0xff]
  %v41 = vld [vmem:[%s0 + $0xa8] sm:$0xff]
  %v42 = vld [vmem:[%s0 + $0xb0] sm:$0xff]
  %v43 = vld [vmem:[%s0 + $0xb8] sm:$0xff]
  %v44 = vld [vmem:[%s0 + $0xc0] sm:$0xff]
  %v45 = vld [vmem:[%s0 + $0xc8] sm:$0xff]
  %v46 = vld [vmem:[%s0 + $0xd0] sm:$0xff]
  %v47 = vld [vmem:[%s0 + $0xd8] sm:$0xff]
  %v48 = vld [vmem:[%s0 + $0xe0] sm:$0xff]
  %v49 = vld [vmem:[%s0 + $0xe8] sm:$0xff]
  %v50 = vld [vmem:[%s0 + $0xf0] sm:$0xff]
  %v51 = vld [vmem:[%s0 + $0xf8] sm:$0xff]
  %v52 = vadd.f32 %v20, %v21
  %53 = vadd.xlane.f32.xlu0 %v52
  %v54 = vpop.xlane.xlu0 %53
  %v55 = vadd.f32 %v22, %v23
  %56 = vadd.xlane.f32.xlu0 %v55
  %v57 = vpop.xlane.xlu0 %56
  %v58 = vadd.f32 %v24, %v25
  %59 = vadd.xlane.f32.xlu0 %v58
  %v60 = vpop.xlane.xlu0 %59
  %v61 = vadd.f32 %v26, %v27
  %62 = vadd.xlane.f32.xlu0 %v61
  %v63 = vpop.xlane.xlu0 %62
  %v64 = vadd.f32 %v28, %v29
  %65 = vadd.xlane.f32.xlu0 %v64
  %v66 = vpop.xlane.xlu0 %65
  %v67 = vadd.f32 %v30, %v31
  %68 = vadd.xlane.f32.xlu0 %v67
  %v69 = vpop.xlane.xlu0 %68
  %v70 = vadd.f32 %v32, %v33
  %71 = vadd.xlane.f32.xlu0 %v70
  %v72 = vpop.xlane.xlu0 %71
  %v73 = vadd.f32 %v34, %v35
  %74 = vadd.xlane.f32.xlu0 %v73
  %v75 = vpop.xlane.xlu0 %74
  %v76 = vadd.f32 %v36, %v37
  %77 = vadd.xlane.f32.xlu0 %v76
  %v78 = vpop.xlane.xlu0 %77
  %v79 = vadd.f32 %v38, %v39
  %80 = vadd.xlane.f32.xlu0 %v79
  %v81 = vpop.xlane.xlu0 %80
  %v82 = vadd.f32 %v40, %v41
  %83 = vadd.xlane.f32.xlu0 %v82
  %v84 = vpop.xlane.xlu0 %83
  %v85 = vadd.f32 %v42, %v43
  %86 = vadd.xlane.f32.xlu0 %v85
  %v87 = vpop.xlane.xlu0 %86
  %v88 = vadd.f32 %v44, %v45
  %89 = vadd.xlane.f32.xlu0 %v88
  %v90 = vpop.xlane.xlu0 %89
  %v91 = vadd.f32 %v46, %v47
  %92 = vadd.xlane.f32.xlu0 %v91
  %v93 = vpop.xlane.xlu0 %92
  %v94 = vadd.f32 %v48, %v49
  %95 = vadd.xlane.f32.xlu0 %v94
  %v96 = vpop.xlane.xlu0 %95
  %v97 = vadd.f32 %v50, %v51
  %98 = vadd.xlane.f32.xlu0 %v97
  %v99 = vpop.xlane.xlu0 %98
  %v100 = vadd.f32 %v54, 0.0
  %v101 = vadd.f32 %v57, 0.0
  %v102 = vadd.f32 %v60, 0.0
  %v103 = vadd.f32 %v63, 0.0
  %v104 = vadd.f32 %v66, 0.0
  %v105 = vadd.f32 %v69, 0.0
  %v106 = vadd.f32 %v72, 0.0
  %v107 = vadd.f32 %v75, 0.0
  %v108 = vadd.f32 %v78, 0.0
  %v109 = vadd.f32 %v81, 0.0
  %v110 = vadd.f32 %v84, 0.0
  %v111 = vadd.f32 %v87, 0.0
  %v112 = vadd.f32 %v90, 0.0
  %v113 = vadd.f32 %v93, 0.0
  %v114 = vadd.f32 %v96, 0.0
  %v115 = vadd.f32 %v99, 0.0
  %v116 = vmul.f32 %v100, 0.00390625
  %v117 = vmul.f32 %v101, 0.00390625
  %v118 = vmul.f32 %v102, 0.00390625
  %v119 = vmul.f32 %v103, 0.00390625
  %v120 = vmul.f32 %v104, 0.00390625
  %v121 = vmul.f32 %v105, 0.00390625
  %v122 = vmul.f32 %v106, 0.00390625
  %v123 = vmul.f32 %v107, 0.00390625
  %v124 = vmul.f32 %v108, 0.00390625
  %v125 = vmul.f32 %v109, 0.00390625
  %v126 = vmul.f32 %v110, 0.00390625
  %v127 = vmul.f32 %v111, 0.00390625
  %v128 = vmul.f32 %v112, 0.00390625
  %v129 = vmul.f32 %v113, 0.00390625
  %v130 = vmul.f32 %v114, 0.00390625
  %v131 = vmul.f32 %v115, 0.00390625
  %v132 = vld [vmem:[%s1] sm:$0xff]
  %v133 = vld [vmem:[%s1 + $0x8] sm:$0xff]
  %v134 = vld [vmem:[%s1 + $0x10] sm:$0xff]
  %v135 = vld [vmem:[%s1 + $0x18] sm:$0xff]
  %v136 = vld [vmem:[%s2] sm:$0x1]
  %v138 = vlaneseq
  %v139 = vshrl.u32 %v138, 7
  %v140 = vsub.s32 0, %v139
  %v141 = vrot.slane %v136, %v140
  %v159 = vlaneseq
  %v160 = vand.u32 %v159, 127
  %v161 = vlaneseq
  %v162 = vshrl.u32 %v161, 7
  %v163 = vsub.s32 %v160, %v162
  %v164 = vrot.slane %v116, %v163
  %v165 = vadd.s32 %v160, 4294967288
  %v166 = vlaneseq
  %v167 = vshrl.u32 %v166, 7
  %v168 = vsub.s32 %v165, %v167
  %v169 = vrot.slane %v117, %v168
  %vm170 = vcmask 130112
  %v171 = vsel %vm170, %v169, %v164
  %v172 = vadd.s32 %v160, 4294967280
  %v173 = vlaneseq
  %v174 = vshrl.u32 %v173, 7
  %v175 = vsub.s32 %v172, %v174
  %v176 = vrot.slane %v118, %v175
  %vm177 = vcmask 195712
  %v178 = vsel %vm177, %v176, %v171
  %v179 = vadd.s32 %v160, 4294967272
  %v180 = vlaneseq
  %v181 = vshrl.u32 %v180, 7
  %v182 = vsub.s32 %v179, %v181
  %v183 = vrot.slane %v119, %v182
  %vm184 = vcmask 261312
  %v185 = vsel %vm184, %v183, %v178
  %v186 = vlaneseq
  %v187 = vshrl.u32 %v186, 7
  %v188 = vsub.s32 %v160, %v187
  %v189 = vrot.slane %v120, %v188
  %v190 = vlaneseq
  %v191 = vshrl.u32 %v190, 7
  %v192 = vsub.s32 %v165, %v191
  %v193 = vrot.slane %v121, %v192
  %v194 = vsel %vm170, %v193, %v189
  %v195 = vlaneseq
  %v196 = vshrl.u32 %v195, 7
  %v197 = vsub.s32 %v172, %v196
  %v198 = vrot.slane %v122, %v197
  %v199 = vsel %vm177, %v198, %v194
  %v200 = vlaneseq
  %v201 = vshrl.u32 %v200, 7
  %v202 = vsub.s32 %v179, %v201
  %v203 = vrot.slane %v123, %v202
  %v204 = vsel %vm184, %v203, %v199
  %v205 = vlaneseq
  %v206 = vshrl.u32 %v205, 7
  %v207 = vsub.s32 %v160, %v206
  %v208 = vrot.slane %v124, %v207
  %v209 = vlaneseq
  %v210 = vshrl.u32 %v209, 7
  %v211 = vsub.s32 %v165, %v210
  %v212 = vrot.slane %v125, %v211
  %v213 = vsel %vm170, %v212, %v208
  %v214 = vlaneseq
  %v215 = vshrl.u32 %v214, 7
  %v216 = vsub.s32 %v172, %v215
  %v217 = vrot.slane %v126, %v216
  %v218 = vsel %vm177, %v217, %v213
  %v219 = vlaneseq
  %v220 = vshrl.u32 %v219, 7
  %v221 = vsub.s32 %v179, %v220
  %v222 = vrot.slane %v127, %v221
  %v223 = vsel %vm184, %v222, %v218
  %v224 = vlaneseq
  %v225 = vshrl.u32 %v224, 7
  %v226 = vsub.s32 %v160, %v225
  %v227 = vrot.slane %v128, %v226
  %v228 = vlaneseq
  %v229 = vshrl.u32 %v228, 7
  %v230 = vsub.s32 %v165, %v229
  %v231 = vrot.slane %v129, %v230
  %v232 = vsel %vm170, %v231, %v227
  %v233 = vlaneseq
  %v234 = vshrl.u32 %v233, 7
  %v235 = vsub.s32 %v172, %v234
  %v236 = vrot.slane %v130, %v235
  %v237 = vsel %vm177, %v236, %v232
  %v238 = vlaneseq
  %v239 = vshrl.u32 %v238, 7
  %v240 = vsub.s32 %v179, %v239
  %v241 = vrot.slane %v131, %v240
  %v242 = vsel %vm184, %v241, %v237
  %vm243 = vcmask 1041409
  %v244 = vsel %vm243, %v204, %v185
  %vm245 = vcmask 1042434
  %v246 = vsel %vm245, %v223, %v244
  %vm247 = vcmask 1043459
  %v248 = vsel %vm247, %v242, %v246
  %vm249 = vcmask 261120
  %v250 = vsel %vm249, %v248, 0
  %252 = vmatprep.subr.mxu0 0.0
  %253 = vmatpush1.msra.mxu0 %v132
  %254 = vmatprep.subr.mxu0 0.0
  %255 = vmatpush1.msra.mxu0 %v133
  %256 = vmatprep.subr.mxu0 0.0
  %257 = vmatpush1.msra.mxu0 %v134
  %258 = vmatprep.subr.mxu0 0.0
  %259 = vmatpush1.msra.mxu0 %v135
  %260 = vmatprep.subr.mxu0 0.0
  %261 = vmatpush1.msra.mxu0 0.0
  %262 = vmatprep.subr.mxu0 0.0
  %263 = vmatpush1.msra.mxu0 0.0
  %264 = vmatprep.subr.mxu0 0.0
  %265 = vmatpush1.msra.mxu0 0.0
  %266 = vmatprep.subr.mxu0 0.0
  %267 = vmatpush1.msra.mxu0 0.0
  %268 = vmatprep.subr.mxu0 0.0
  %269 = vmatpush1.msra.mxu0 0.0
  %270 = vmatprep.subr.mxu0 0.0
  %271 = vmatpush1.msra.mxu0 0.0
  %272 = vmatprep.subr.mxu0 0.0
  %273 = vmatpush1.msra.mxu0 0.0
  %274 = vmatprep.subr.mxu0 0.0
  %275 = vmatpush1.msra.mxu0 0.0
  %276 = vmatprep.subr.mxu0 0.0
  %277 = vmatpush1.msra.mxu0 0.0
  %278 = vmatprep.subr.mxu0 0.0
  %279 = vmatpush1.msra.mxu0 0.0
  %280 = vmatprep.subr.mxu0 0.0
  %281 = vmatpush1.msra.mxu0 0.0
  %282 = vmatprep.subr.mxu0 0.0
  %283 = vmatpush1.msra.mxu0 0.0
  %284 = vmatprep.subr.mxu0 0.0
  %285 = vmatpush1.msra.mxu0 0.0
  %286 = vmatprep.subr.mxu0 0.0
  %287 = vmatpush1.msra.mxu0 0.0
  %288 = vmatprep.subr.mxu0 0.0
  %289 = vmatpush1.msra.mxu0 0.0
  %290 = vmatprep.subr.mxu0 0.0
  %291 = vmatpush1.msra.mxu0 0.0
  %292 = vmatprep.subr.mxu0 0.0
  %293 = vmatpush1.msra.mxu0 0.0
  %294 = vmatprep.subr.mxu0 0.0
  %295 = vmatpush1.msra.mxu0 0.0
  %296 = vmatprep.subr.mxu0 0.0
  %297 = vmatpush1.msra.mxu0 0.0
  %298 = vmatprep.subr.mxu0 0.0
  %299 = vmatpush1.msra.mxu0 0.0
  %300 = vmatprep.subr.mxu0 0.0
  %301 = vmatpush1.msra.mxu0 0.0
  %302 = vmatprep.subr.mxu0 0.0
  %303 = vmatpush1.msra.mxu0 0.0
  %304 = vmatprep.subr.mxu0 0.0
  %305 = vmatpush1.msra.mxu0 0.0
  %306 = vmatprep.subr.mxu0 0.0
  %307 = vmatpush1.msra.mxu0 0.0
  %308 = vmatprep.subr.mxu0 0.0
  %309 = vmatpush1.msra.mxu0 0.0
  %310 = vmatprep.subr.mxu0 0.0
  %311 = vmatpush1.msra.mxu0 0.0
  %312 = vmatprep.subr.mxu0 0.0
  %313 = vmatpush1.msra.mxu0 0.0
  %314 = vmatprep.subr.mxu0 0.0
  %315 = vmatpush1.msra.mxu0 0.0
  %316 = vmatprep.mubr.f32.mxu0 0.0
  %317 = vmatmul.mubr.f32.gmra.mrb[0].mxu0 %v250
  %v318 = vpop.f32.mrb[0].mxu0
  %v319 = vadd.f32 %v141, %v318
  %v320 = vpop.f32.mrb[0].mxu0
  %321 = vdwg.mxu0
  %v322 = vmax.f32 %v319, 0.0
  %v323 = vld [vmem:[%s3] sm:$0xff]
  %v324 = vld [vmem:[%s4] sm:$0x1]
  %v326 = vlaneseq
  %v327 = vshrl.u32 %v326, 7
  %v328 = vsub.s32 0, %v327
  %v329 = vrot.slane %v324, %v328
  %vm331 = vcmask 64512
  %v333 = vsel %vm331, %v322, 0
  %335 = vmatprep.subr.mxu0 0.0
  %336 = vmatpush1.msra.mxu0 %v323
  %337 = vmatprep.subr.mxu0 0.0
  %338 = vmatpush1.msra.mxu0 0.0
  %339 = vmatprep.subr.mxu0 0.0
  %340 = vmatpush1.msra.mxu0 0.0
  %341 = vmatprep.subr.mxu0 0.0
  %342 = vmatpush1.msra.mxu0 0.0
  %343 = vmatprep.subr.mxu0 0.0
  %344 = vmatpush1.msra.mxu0 0.0
  %345 = vmatprep.subr.mxu0 0.0
  %346 = vmatpush1.msra.mxu0 0.0
  %347 = vmatprep.subr.mxu0 0.0
  %348 = vmatpush1.msra.mxu0 0.0
  %349 = vmatprep.subr.mxu0 0.0
  %350 = vmatpush1.msra.mxu0 0.0
  %351 = vmatprep.subr.mxu0 0.0
  %352 = vmatpush1.msra.mxu0 0.0
  %353 = vmatprep.subr.mxu0 0.0
  %354 = vmatpush1.msra.mxu0 0.0
  %355 = vmatprep.subr.mxu0 0.0
  %356 = vmatpush1.msra.mxu0 0.0
  %357 = vmatprep.subr.mxu0 0.0
  %358 = vmatpush1.msra.mxu0 0.0
  %359 = vmatprep.subr.mxu0 0.0
  %360 = vmatpush1.msra.mxu0 0.0
  %361 = vmatprep.subr.mxu0 0.0
  %362 = vmatpush1.msra.mxu0 0.0
  %363 = vmatprep.subr.mxu0 0.0
  %364 = vmatpush1.msra.mxu0 0.0
  %365 = vmatprep.subr.mxu0 0.0
  %366 = vmatpush1.msra.mxu0 0.0
  %367 = vmatprep.subr.mxu0 0.0
  %368 = vmatpush1.msra.mxu0 0.0
  %369 = vmatprep.subr.mxu0 0.0
  %370 = vmatpush1.msra.mxu0 0.0
  %371 = vmatprep.subr.mxu0 0.0
  %372 = vmatpush1.msra.mxu0 0.0
  %373 = vmatprep.subr.mxu0 0.0
  %374 = vmatpush1.msra.mxu0 0.0
  %375 = vmatprep.subr.mxu0 0.0
  %376 = vmatpush1.msra.mxu0 0.0
  %377 = vmatprep.subr.mxu0 0.0
  %378 = vmatpush1.msra.mxu0 0.0
  %379 = vmatprep.subr.mxu0 0.0
  %380 = vmatpush1.msra.mxu0 0.0
  %381 = vmatprep.subr.mxu0 0.0
  %382 = vmatpush1.msra.mxu0 0.0
  %383 = vmatprep.subr.mxu0 0.0
  %384 = vmatpush1.msra.mxu0 0.0
  %385 = vmatprep.subr.mxu0 0.0
  %386 = vmatpush1.msra.mxu0 0.0
  %387 = vmatprep.subr.mxu0 0.0
  %388 = vmatpush1.msra.mxu0 0.0
  %389 = vmatprep.subr.mxu0 0.0
  %390 = vmatpush1.msra.mxu0 0.0
  %391 = vmatprep.subr.mxu0 0.0
  %392 = vmatpush1.msra.mxu0 0.0
  %393 = vmatprep.subr.mxu0 0.0
  %394 = vmatpush1.msra.mxu0 0.0
  %395 = vmatprep.subr.mxu0 0.0
  %396 = vmatpush1.msra.mxu0 0.0
  %397 = vmatprep.subr.mxu0 0.0
  %398 = vmatpush1.msra.mxu0 0.0
  %399 = vmatprep.mubr.f32.mxu0 0.0
  %400 = vmatmul.mubr.f32.gmra.mrb[0].mxu0 %v333
  %v401 = vpop.f32.mrb[0].mxu0
  %v402 = vadd.f32 %v329, %v401
  %v403 = vpop.f32.mrb[0].mxu0
  %404 = vdwg.mxu0
  %v405 = vxor.u32 %v402, 2147483648
  %v406 = vmul.f32 %v405, 1.442695
  %v407 = vpow.pop %v406
  %v408 = vadd.f32 %v407, 1.0
  %v409 = vrcp.pop %v408
  %v410 = vmul.f32 1.0, %v409
  %v411 = vlaneseq
  %v412 = vshrl.u32 %v411, 7
  %v413 = vsub.s32 0, %v412
  %v414 = vrot.slane %v410, %v413
  %416 = vbcast.lane.b32.xlu0 %v414, 256
  %v417 = vpop.permute.xlu0 %416
  %s419 = sor.u32 256, 8
  %420 = vbcast.lane.b32.xlu0 %v414, %s419
  %v421 = vpop.permute.xlu0 %420
  %s423 = sor.u32 256, 16
  %424 = vbcast.lane.b32.xlu0 %v414, %s423
  %v425 = vpop.permute.xlu0 %424
  %s427 = sor.u32 256, 24
  %428 = vbcast.lane.b32.xlu0 %v414, %s427
  %v429 = vpop.permute.xlu0 %428
  %v430 = vlaneseq
  %v431 = vshrl.u32 %v430, 7
  %v432 = vsub.s32 1, %v431
  %v433 = vrot.slane %v410, %v432
  %435 = vbcast.lane.b32.xlu0 %v433, 256
  %v436 = vpop.permute.xlu0 %435
  %s438 = sor.u32 256, 8
  %439 = vbcast.lane.b32.xlu0 %v433, %s438
  %v440 = vpop.permute.xlu0 %439
  %s442 = sor.u32 256, 16
  %443 = vbcast.lane.b32.xlu0 %v433, %s442
  %v444 = vpop.permute.xlu0 %443
  %s446 = sor.u32 256, 24
  %447 = vbcast.lane.b32.xlu0 %v433, %s446
  %v448 = vpop.permute.xlu0 %447
  %v449 = vlaneseq
  %v450 = vshrl.u32 %v449, 7
  %v451 = vsub.s32 2, %v450
  %v452 = vrot.slane %v410, %v451
  %454 = vbcast.lane.b32.xlu0 %v452, 256
  %v455 = vpop.permute.xlu0 %454
  %s457 = sor.u32 256, 8
  %458 = vbcast.lane.b32.xlu0 %v452, %s457
  %v459 = vpop.permute.xlu0 %458
  %s461 = sor.u32 256, 16
  %462 = vbcast.lane.b32.xlu0 %v452, %s461
  %v463 = vpop.permute.xlu0 %462
  %s465 = sor.u32 256, 24
  %466 = vbcast.lane.b32.xlu0 %v452, %s465
  %v467 = vpop.permute.xlu0 %466
  %v468 = vlaneseq
  %v469 = vshrl.u32 %v468, 7
  %v470 = vsub.s32 3, %v469
  %v471 = vrot.slane %v410, %v470
  %473 = vbcast.lane.b32.xlu0 %v471, 256
  %v474 = vpop.permute.xlu0 %473
  %s476 = sor.u32 256, 8
  %477 = vbcast.lane.b32.xlu0 %v471, %s476
  %v478 = vpop.permute.xlu0 %477
  %s480 = sor.u32 256, 16
  %481 = vbcast.lane.b32.xlu0 %v471, %s480
  %v482 = vpop.permute.xlu0 %481
  %s484 = sor.u32 256, 24
  %485 = vbcast.lane.b32.xlu0 %v471, %s484
  %v486 = vpop.permute.xlu0 %485
  %v487 = vmul.f32 %v20, %v417
  %v488 = vmul.f32 %v21, %v417
  %v489 = vmul.f32 %v22, %v421
  %v490 = vmul.f32 %v23, %v421
  %v491 = vmul.f32 %v24, %v425
  %v492 = vmul.f32 %v25, %v425
  %v493 = vmul.f32 %v26, %v429
  %v494 = vmul.f32 %v27, %v429
  %v495 = vmul.f32 %v28, %v436
  %v496 = vmul.f32 %v29, %v436
  %v497 = vmul.f32 %v30, %v440
  %v498 = vmul.f32 %v31, %v440
  %v499 = vmul.f32 %v32, %v444
  %v500 = vmul.f32 %v33, %v444
  %v501 = vmul.f32 %v34, %v448
  %v502 = vmul.f32 %v35, %v448
  %v503 = vmul.f32 %v36, %v455
  %v504 = vmul.f32 %v37, %v455
  %v505 = vmul.f32 %v38, %v459
  %v506 = vmul.f32 %v39, %v459
  %v507 = vmul.f32 %v40, %v463
  %v508 = vmul.f32 %v41, %v463
  %v509 = vmul.f32 %v42, %v467
  %v510 = vmul.f32 %v43, %v467
  %v511 = vmul.f32 %v44, %v474
  %v512 = vmul.f32 %v45, %v474
  %v513 = vmul.f32 %v46, %v478
  %v514 = vmul.f32 %v47, %v478
  %v515 = vmul.f32 %v48, %v482
  %v516 = vmul.f32 %v49, %v482
  %v517 = vmul.f32 %v50, %v486
  %v518 = vmul.f32 %v51, %v486
  %519 = vst [vmem:[%s5] sm:$0xff] %v487
  %520 = vst [vmem:[%s5 + $0x8] sm:$0xff] %v488
  %521 = vst [vmem:[%s5 + $0x10] sm:$0xff] %v489
  %522 = vst [vmem:[%s5 + $0x18] sm:$0xff] %v490
  %523 = vst [vmem:[%s5 + $0x20] sm:$0xff] %v491
  %524 = vst [vmem:[%s5 + $0x28] sm:$0xff] %v492
  %525 = vst [vmem:[%s5 + $0x30] sm:$0xff] %v493
  %526 = vst [vmem:[%s5 + $0x38] sm:$0xff] %v494
  %527 = vst [vmem:[%s5 + $0x40] sm:$0xff] %v495
  %528 = vst [vmem:[%s5 + $0x48] sm:$0xff] %v496
  %529 = vst [vmem:[%s5 + $0x50] sm:$0xff] %v497
  %530 = vst [vmem:[%s5 + $0x58] sm:$0xff] %v498
  %531 = vst [vmem:[%s5 + $0x60] sm:$0xff] %v499
  %532 = vst [vmem:[%s5 + $0x68] sm:$0xff] %v500
  %533 = vst [vmem:[%s5 + $0x70] sm:$0xff] %v501
  %534 = vst [vmem:[%s5 + $0x78] sm:$0xff] %v502
  %535 = vst [vmem:[%s5 + $0x80] sm:$0xff] %v503
  %536 = vst [vmem:[%s5 + $0x88] sm:$0xff] %v504
  %537 = vst [vmem:[%s5 + $0x90] sm:$0xff] %v505
  %538 = vst [vmem:[%s5 + $0x98] sm:$0xff] %v506
  %539 = vst [vmem:[%s5 + $0xa0] sm:$0xff] %v507
  %540 = vst [vmem:[%s5 + $0xa8] sm:$0xff] %v508
  %541 = vst [vmem:[%s5 + $0xb0] sm:$0xff] %v509
  %542 = vst [vmem:[%s5 + $0xb8] sm:$0xff] %v510
  %543 = vst [vmem:[%s5 + $0xc0] sm:$0xff] %v511
  %544 = vst [vmem:[%s5 + $0xc8] sm:$0xff] %v512
  %545 = vst [vmem:[%s5 + $0xd0] sm:$0xff] %v513
  %546 = vst [vmem:[%s5 + $0xd8] sm:$0xff] %v514
  %547 = vst [vmem:[%s5 + $0xe0] sm:$0xff] %v515
  %548 = vst [vmem:[%s5 + $0xe8] sm:$0xff] %v516
  %549 = vst [vmem:[%s5 + $0xf0] sm:$0xff] %v517
  %550 = vst [vmem:[%s5 + $0xf8] sm:$0xff] %v518
  // Predicated region
  $region22: #{se_block.1} parent=0 // pred_check
    _
  $region23: #{se_block.1} parent=0 // pred_check_branch
    %552 = sbr.rel (0) target = $region25
  $region24: #{se_block.1} parent=0 // pred_region
    _
  $region25: #{se_block.1} parent=0 // pred_fallthru
    _
  // Predicated region
  $region26: #{se_block.1} parent=0 // pred_check
    _
  $region27: #{se_block.1} parent=0 // pred_check_branch
    %554 = sbr.rel (0) target = $region29
  $region28: #{se_block.1} parent=0 // pred_region
    _
  $region29: #{se_block.1} parent=0 // pred_fallthru
    _

</llo_original>
